<compile_context>
chip_gen: v7x
topology: tpu7x:2x2x1
jax: 0.10.0
libtpu: 0.0.40
codegen_flags: <defaults>
</compile_context>

<pallas_src>
import jax
import jax.numpy as jnp
from jax.experimental import pallas as pl
from jax.experimental.pallas import tpu as pltpu


def _round_up(x, m):
    return (x + m - 1) // m * m


def _linear_kernel(x_ref, w_ref, b_ref, o_ref):
    # x_ref: (TILE_N, H) f32     w_ref: (H, C) bf16
    # b_ref: (1, C) f32          o_ref: (TILE_N, C) f32
    x = x_ref[...].astype(jnp.bfloat16)          # cast in-register, not in HBM
    acc = jnp.dot(x, w_ref[...], preferred_element_type=jnp.float32)
    o_ref[...] = (acc + b_ref[...]).astype(o_ref.dtype)


def _choose_tile_n(n, h, c, target_bytes=6 << 20):
    """Row-tile size, sized by the *VMEM* footprint of one (input, output)
    block pair (lane dim pads to 128 in VMEM even when H or C are small).
    ~6 MiB per pair -> ~12 MiB double-buffered; fits v5e/v6e/v7x scoped VMEM.
    Also caps at ceil(N/2) so v7x's two TensorCores both get work."""
    vmem_row = _round_up(h, 128) * 4 + _round_up(c, 128) * 4
    tile = max(8, (target_bytes // vmem_row) // 8 * 8)
    half = max(8, _round_up(-(-n // 2), 8))      # >= 2 row blocks when possible
    tile = min(tile, half)
    return min(tile, _round_up(n, 8))


def fea_crosse_pallas(x2d, w_t, b2d, *, force_pallas=False,
                      min_pallas_bytes=1 << 20):
    """nn.Linear(H, C):  y = x2d @ W^T + b.

    x2d: (N, H) f32 activations.
    w_t: (H, C) bf16  — pre-transposed / pre-cast weight (done once in init).
    b2d: (1, C) f32   — bias.
    returns (N, C) f32 logits.
    """
    n, h = x2d.shape
    c = w_t.shape[1]

    # Small-N fallback: pallas_call launch/pipeline overhead exceeds the work;
    # let XLA fuse the tiny GEMM instead.
    if not force_pallas and n * h * 4 < min_pallas_bytes:
        return jnp.dot(x2d.astype(jnp.bfloat16), w_t,
                       preferred_element_type=jnp.float32) + b2d

    tile_n = _choose_tile_n(n, h, c)
    grid = (pl.cdiv(n, tile_n),)                 # ragged edge handled by Pallas

    # Explicit VMEM budget (lane-padded footprints + headroom).
    h_lanes = _round_up(h, 128)
    c_lanes = _round_up(c, 128)
    vmem_bytes = (
        2 * tile_n * h_lanes * 4                 # streamed f32 activations (x2 buf)
        + 2 * tile_n * c_lanes * 4               # output tiles (x2 buf)
        + 2 * _round_up(h, 8) * c_lanes * 2      # resident bf16 weight
        + 2 * 8 * c_lanes * 4                    # resident bias
        + (4 << 20)                              # compiler headroom
    )
    vmem_bytes = int(max(vmem_bytes, 24 << 20))

    out = pl.pallas_call(
        _linear_kernel,
        out_shape=jax.ShapeDtypeStruct((n, c), jnp.float32),
        grid=grid,
        in_specs=[
            pl.BlockSpec((tile_n, h), lambda i: (i, 0)),   # streamed rows
            pl.BlockSpec((h, c), lambda i: (0, 0)),        # resident weight
            pl.BlockSpec((1, c), lambda i: (0, 0)),        # resident bias
        ],
        out_specs=pl.BlockSpec((tile_n, c), lambda i: (i, 0)),
        compiler_params=pltpu.CompilerParams(
            dimension_semantics=("parallel",),             # megacore-shardable
            vmem_limit_bytes=vmem_bytes,
        ),
        cost_estimate=pl.CostEstimate(
            flops=2 * n * h * c,
            transcendentals=0,
            bytes_accessed=n * h * 4 + h * c * 2 + c * 4 + n * c * 4,
        ),
    )(x2d, w_t, b2d)
    return out


class ClassifyPallas:
    """Mirror of the PyTorch Classify module."""

    def __init__(self, output_of_transformer_size, class_num, key):
        kw, kb = jax.random.split(key)
        self.class_num = class_num
        # nn.Linear-style init: W (C, H), b (C,)
        bound = 1.0 / jnp.sqrt(output_of_transformer_size)
        self.weight = jax.random.uniform(
            kw, (class_num, output_of_transformer_size),
            minval=-bound, maxval=bound, dtype=jnp.float32)
        self.bias = jax.random.uniform(
            kb, (class_num,), minval=-bound, maxval=bound, dtype=jnp.float32)
        # Precompute kernel-side parameter layouts once (not per call).
        self.w_t = self.weight.T.astype(jnp.bfloat16)            # (H, C)
        self.b2d = self.bias.reshape(1, class_num).astype(jnp.float32)

    def _trajembedding(self, data, filename_of_event, traj_label, event_len):
        # TODO(synk): TrajEmbedding not defined in the source file; identity.
        return data, traj_label

    def __call__(self, data, filename_of_event, traj_label, event_len):
        data, label = self._trajembedding(data, filename_of_event,
                                          traj_label, event_len)
        h = data.shape[-1]
        x2d = data.reshape(-1, h)                                 # (N, H)
        logits2d = fea_crosse_pallas(x2d, self.w_t, self.b2d)
        logits = logits2d.reshape(*data.shape[:-1], self.class_num)
        return logits, label


if __name__ == "__main__":
    key = jax.random.PRNGKey(0)
    k_data, k_label, k_model, k_x2, k_w2, k_b2 = jax.random.split(key, 6)

    batch, seq, hidden, class_num = 2, 8, 32, 5
    data = jax.random.normal(k_data, (batch, seq, hidden), dtype=jnp.float32)
    traj_label = jax.random.randint(k_label, (batch,), 0, class_num)
    filename_of_event = None          # unused by the classification head
    event_len = jnp.full((batch,), seq, dtype=jnp.int32)

    model = ClassifyPallas(hidden, class_num, k_model)

    # 1) Module forward at demo scale (auto-dispatch: small-N fused fallback).
    logits, label = model(data, filename_of_event, traj_label, event_len)
    jax.block_until_ready(logits)
    jax.block_until_ready(label)
    assert logits.shape == (batch, seq, class_num)

    x2d = data.reshape(-1, hidden)
    ref_bf16 = (jnp.dot(x2d.astype(jnp.bfloat16), model.w_t,
                        preferred_element_type=jnp.float32) + model.b2d)
    ref_f32 = x2d @ model.weight.T + model.bias
    got = logits.reshape(-1, class_num)
    assert jnp.allclose(got, ref_bf16, atol=1e-2, rtol=1e-2), "bf16-ref mismatch"
    assert jnp.allclose(got, ref_f32, atol=5e-2, rtol=5e-2), "f32-ref mismatch"

    # 2) Force the Pallas kernel path on the same small input.
    got_pl = fea_crosse_pallas(x2d, model.w_t, model.b2d, force_pallas=True)
    jax.block_until_ready(got_pl)
    assert got_pl.shape == (batch * seq, class_num)
    assert jnp.allclose(got_pl, ref_bf16, atol=1e-2, rtol=1e-2), \
        "pallas small-N mismatch"

    # 3) Larger ragged-N check: multi-block grid + masked edge block.
    n2, h2, c2 = 1000, 256, 5
    x2 = jax.random.normal(k_x2, (n2, h2), dtype=jnp.float32)
    w2 = jax.random.uniform(k_w2, (c2, h2), minval=-0.1, maxval=0.1,
                            dtype=jnp.float32)
    b2 = jax.random.uniform(k_b2, (c2,), minval=-0.1, maxval=0.1,
                            dtype=jnp.float32)
    w2_t = w2.T.astype(jnp.bfloat16)
    b2_2d = b2.reshape(1, c2).astype(jnp.float32)
    got2 = fea_crosse_pallas(x2, w2_t, b2_2d, force_pallas=True)
    jax.block_until_ready(got2)
    ref2 = (jnp.dot(x2.astype(jnp.bfloat16), w2_t,
                    preferred_element_type=jnp.float32) + b2_2d)
    assert got2.shape == (n2, c2)
    assert jnp.allclose(got2, ref2, atol=2e-2, rtol=2e-2), "pallas ragged mismatch"

    print("KERNEL_OK")
</pallas_src>

<mosaic_0001>
module attributes {stable_mosaic.version = 11 : i64} {
  func.func @_linear_kernel(%arg0: i32, %arg1: memref<8x32xf32, #tpu.memory_space<vmem>>, %arg2: memref<32x5xbf16, #tpu.memory_space<vmem>>, %arg3: memref<1x5xf32, #tpu.memory_space<vmem>>, %arg4: memref<8x5xf32, #tpu.memory_space<vmem>>) attributes {dimension_semantics = [#tpu.dimension_semantics<parallel>], iteration_bounds = array<i64: 2>, scalar_prefetch = 0 : i64, scratch_operands = 0 : i64, tpu.core_type = #tpu.core_type<tc>, window_params = [{transform_indices = @transform_0, window_bounds = array<i64: 8, 32>}, {pipeline_mode = #tpu.pipeline_mode<synchronous>, transform_indices = @transform_1, window_bounds = array<i64: 32, 5>}, {pipeline_mode = #tpu.pipeline_mode<synchronous>, transform_indices = @transform_2, window_bounds = array<i64: 1, 5>}, {transform_indices = @transform_3, window_bounds = array<i64: 8, 5>}]} {
    %c0 = arith.constant 0 : index
    %c0_0 = arith.constant 0 : index
    %0 = vector.load %arg1[%c0, %c0_0] : memref<8x32xf32, #tpu.memory_space<vmem>>, vector<8x32xf32>
    %1 = arith.truncf %0 : vector<8x32xf32> to vector<8x32xbf16>
    %c0_1 = arith.constant 0 : index
    %c0_2 = arith.constant 0 : index
    %2 = vector.load %arg2[%c0_1, %c0_2] : memref<32x5xbf16, #tpu.memory_space<vmem>>, vector<32x5xbf16>
    %cst = arith.constant dense<0.000000e+00> : vector<8x5xf32>
    %3 = tpu.matmul %1, %2, %cst {dimension_numbers = #tpu.dot_dimension_numbers<[1], [0], [0], [1], [0, 0, 1, 1], [], []>} : vector<8x32xbf16>, vector<32x5xbf16>, vector<8x5xf32> -> vector<8x5xf32>
    %c0_3 = arith.constant 0 : index
    %c0_4 = arith.constant 0 : index
    %4 = vector.load %arg3[%c0_3, %c0_4] : memref<1x5xf32, #tpu.memory_space<vmem>>, vector<1x5xf32>
    %5 = vector.broadcast %4 : vector<1x5xf32> to vector<8x5xf32>
    %6 = arith.addf %3, %5 : vector<8x5xf32>
    %c0_5 = arith.constant 0 : index
    %c0_6 = arith.constant 0 : index
    %7 = vector.load %arg4[%c0_5, %c0_6] : memref<8x5xf32, #tpu.memory_space<vmem>>, vector<8x5xf32>
    tpu.vector_store %arg4[%c0_5, %c0_6], %6 {strides = array<i32>} : memref<8x5xf32, #tpu.memory_space<vmem>>, vector<8x5xf32>,
    return
  }
  func.func @transform_0(%arg0: i32) -> (i32, i32) {
    %c0_i32 = arith.constant 0 : i32
    %c0_i32_0 = arith.constant 0 : i32
    return %arg0, %c0_i32 : i32, i32
  }
  func.func @transform_1(%arg0: i32) -> (i32, i32) {
    %c0_i32 = arith.constant 0 : i32
    %c0_i32_0 = arith.constant 0 : i32
    %c0_i32_1 = arith.constant 0 : i32
    return %c0_i32, %c0_i32_0 : i32, i32
  }
  func.func @transform_2(%arg0: i32) -> (i32, i32) {
    %c0_i32 = arith.constant 0 : i32
    %c0_i32_0 = arith.constant 0 : i32
    %c0_i32_1 = arith.constant 0 : i32
    return %c0_i32, %c0_i32_0 : i32, i32
  }
  func.func @transform_3(%arg0: i32) -> (i32, i32) {
    %c0_i32 = arith.constant 0 : i32
    %c0_i32_0 = arith.constant 0 : i32
    return %arg0, %c0_i32 : i32, i32
  }
}

</mosaic_0001>

<llo_original>
// kernel: tpu_custom_call.1
$region0: #{tpu_custom_call.1}
  #allocation0 [shape = 'u32[]', space=smem, size = 0x4, offset = 0x4, fixed_abs, tag = 'smem constant byte address 0x4 - core index']
  #allocation1 [shape = 'u32[144,128]{1,0:T(1,128)}', space=vmem, size = 0x12000, scoped, tag = 'internal scratch']
  %s0 = inlined_call_operand.vmem [shape: f32[16,32], index: 0, kind: input, shape index: {}]
  %s1 = inlined_call_operand.vmem [shape: bf16[32,5], index: 1, kind: input, shape index: {}]
  %s2 = inlined_call_operand.vmem [shape: f32[1,5], index: 2, kind: input, shape index: {}]
  %s3 = inlined_call_operand.vmem [shape: f32[16,5], index: 3, kind: output, shape index: {}]
  %s4 = sld [smem:[#allocation0]]
  $region45: #{tpu_custom_call.1} parent=0
    _
  %s6 = ssub.s32 1, %s4
  %s7 = scalar_select 0, %s6, %s4
  loop: start=0, step=1, limit=4
  $region2: #{tpu_custom_call.1} parent=0 // loop_pre_header
    _
  $region3: #{tpu_custom_call.1} parent=0 // loop_header
    %s9 = sphi 0, %s13
    %p10 = scmp.ge.s32.totalorder %s9, 4
    %s19 = sphi 0, %s21
    %s22 = sphi 0, %s19
    %s23 = sphi 0, %s22
    %s39 = sphi 0, %s23
    %s43 = sphi 0, %s43
    %s45 = sphi 0, %s43
    %s46 = sphi 0, %s45
    %s60 = sphi 0, %s46
    %s64 = sphi 0, %s64
    %s66 = sphi 0, %s64
    %s67 = sphi 0, %s66
    %s81 = sphi 0, %s67
    %s87 = sphi 0, %s89
    %s90 = sphi 0, %s87
    %s91 = sphi 0, %s90
    %s107 = sphi 0, %s91
  $region4: #{tpu_custom_call.1} parent=0 // loop_header_branch
    %12 = sbr.rel (%p10) target = $region8
  $region5: #{tpu_custom_call.1} parent=0 // loop_body
    %s14 = ssub.s32 %s9, 1
    %s15 = ssub.s32 %s9, 2
    %s16 = sadd.s32 %s9, 1
    %s17 = ssub.s32 %s9, %s16
    %p18 = scmp.eq.s32.totalorder %s17, 0
    %s20 = sadd.s32 %s19, 1
    %s21 = scalar_select %p18, %s19, %s20
    %p24 = pneg %p18
    %p25 = scmp.eq.s32.totalorder %s9, 1
    %p26 = por %p24, %p25
    %p27 = scmp.ne.s32.totalorder %s19, %s22
    %p28 = scmp.eq.s32.totalorder %s9, 0
    %p29 = por %p27, %p28
    %p30 = scmp.ne.s32.totalorder %s19, %s22
    %p31 = scmp.eq.s32.totalorder %s14, 1
    %p32 = por %p30, %p31
    %p33 = scmp.ne.s32.totalorder %s22, %s23
    %p34 = scmp.eq.s32.totalorder %s14, 0
    %p35 = por %p33, %p34
    %p36 = scmp.ne.s32.totalorder %s22, %s23
    %p37 = scmp.eq.s32.totalorder %s15, 1
    %p38 = por %p36, %p37
    %p40 = scmp.ne.s32.totalorder %s23, %s39
    %p41 = scmp.eq.s32.totalorder %s15, 0
    %p42 = por %p40, %p41
    %s44 = sadd.s32 %s43, 1
    %p47 = scmp.eq.s32.totalorder %s9, 1
    %p48 = scmp.ne.s32.totalorder %s43, %s45
    %p49 = scmp.eq.s32.totalorder %s9, 0
    %p50 = por %p48, %p49
    %p51 = scmp.ne.s32.totalorder %s43, %s45
    %p52 = scmp.eq.s32.totalorder %s14, 1
    %p53 = por %p51, %p52
    %p54 = scmp.ne.s32.totalorder %s45, %s46
    %p55 = scmp.eq.s32.totalorder %s14, 0
    %p56 = por %p54, %p55
    %p57 = scmp.ne.s32.totalorder %s45, %s46
    %p58 = scmp.eq.s32.totalorder %s15, 1
    %p59 = por %p57, %p58
    %p61 = scmp.ne.s32.totalorder %s46, %s60
    %p62 = scmp.eq.s32.totalorder %s15, 0
    %p63 = por %p61, %p62
    %s65 = sadd.s32 %s64, 1
    %p68 = scmp.eq.s32.totalorder %s9, 1
    %p69 = scmp.ne.s32.totalorder %s64, %s66
    %p70 = scmp.eq.s32.totalorder %s9, 0
    %p71 = por %p69, %p70
    %p72 = scmp.ne.s32.totalorder %s64, %s66
    %p73 = scmp.eq.s32.totalorder %s14, 1
    %p74 = por %p72, %p73
    %p75 = scmp.ne.s32.totalorder %s66, %s67
    %p76 = scmp.eq.s32.totalorder %s14, 0
    %p77 = por %p75, %p76
    %p78 = scmp.ne.s32.totalorder %s66, %s67
    %p79 = scmp.eq.s32.totalorder %s15, 1
    %p80 = por %p78, %p79
    %p82 = scmp.ne.s32.totalorder %s67, %s81
    %p83 = scmp.eq.s32.totalorder %s15, 0
    %p84 = por %p82, %p83
    %s85 = ssub.s32 %s9, %s16
    %p86 = scmp.eq.s32.totalorder %s85, 0
    %s88 = sadd.s32 %s87, 1
    %s89 = scalar_select %p86, %s87, %s88
    %p92 = pneg %p86
    %p93 = scmp.eq.s32.totalorder %s9, 1
    %p94 = por %p92, %p93
    %p95 = scmp.ne.s32.totalorder %s87, %s90
    %p96 = scmp.eq.s32.totalorder %s9, 0
    %p97 = por %p95, %p96
    %p98 = scmp.ne.s32.totalorder %s87, %s90
    %p99 = scmp.eq.s32.totalorder %s14, 1
    %p100 = por %p98, %p99
    %p101 = scmp.ne.s32.totalorder %s90, %s91
    %p102 = scmp.eq.s32.totalorder %s14, 0
    %p103 = por %p101, %p102
    %p104 = scmp.ne.s32.totalorder %s90, %s91
    %p105 = scmp.eq.s32.totalorder %s15, 1
    %p106 = por %p104, %p105
    %p108 = scmp.ne.s32.totalorder %s91, %s107
    %p109 = scmp.eq.s32.totalorder %s15, 0
    %p110 = por %p108, %p109
    %p111 = scmp.le.s32.totalorder 1, %s9
    %p112 = scmp.lt.s32.totalorder %s9, 3
    %p113 = pnand %p111, %p112
    %p114 = pneg %p113
    // Predicated region
    $region9: #{tpu_custom_call.1} parent=5 // pred_check
      _
    $region10: #{tpu_custom_call.1} parent=5 // pred_check_branch
      %116 = sbr.rel (%p113) target = $region12
    $region11: #{tpu_custom_call.1} parent=5 // pred_region
      %s117 = ssub.s32 %s9, 1
      // Predicated region
      $region13: #{tpu_custom_call.1} parent=11 // pred_check
        %p118 = pneg %p56
      $region14: #{tpu_custom_call.1} parent=11 // pred_check_branch
        %120 = sbr.rel (%p118) target = $region16
      $region15: #{tpu_custom_call.1} parent=11 // pred_region
        _
      $region16: #{tpu_custom_call.1} parent=11 // pred_fallthru
        _
      // Predicated region
      $region17: #{tpu_custom_call.1} parent=11 // pred_check
        %p121 = pneg %p77
      $region18: #{tpu_custom_call.1} parent=11 // pred_check_branch
        %123 = sbr.rel (%p121) target = $region20
      $region19: #{tpu_custom_call.1} parent=11 // pred_region
        _
      $region20: #{tpu_custom_call.1} parent=11 // pred_fallthru
        _
    $region12: #{tpu_custom_call.1} parent=5 // pred_fallthru
      _
    %p124 = scmp.lt.s32.totalorder %s9, 2
    // Predicated region
    $region21: #{tpu_custom_call.1} parent=5 // pred_check
      %p125 = pneg %p124
    $region22: #{tpu_custom_call.1} parent=5 // pred_check_branch
      %127 = sbr.rel (%p125) target = $region24
    $region23: #{tpu_custom_call.1} parent=5 // pred_region
      // Predicated region
      $region25: #{tpu_custom_call.1} parent=23 // pred_check
        %p128 = pneg %p29
      $region26: #{tpu_custom_call.1} parent=23 // pred_check_branch
        %130 = sbr.rel (%p128) target = $region28
      $region27: #{tpu_custom_call.1} parent=23 // pred_region
        %p131 = scmp.lt.s32.totalorder %s9, 1
        %s132 = scalar_select %p131, %s9, 1
        %s133 = smul.addr %s132, 8
        %s134 = scalar_lea.vmem %s0, %s133
      $region28: #{tpu_custom_call.1} parent=23 // pred_fallthru
        _
    $region24: #{tpu_custom_call.1} parent=5 // pred_fallthru
      _
    %p135 = scmp.le.s32.totalorder 1, %s9
    %p136 = scmp.lt.s32.totalorder %s9, 3
    %p137 = pnand %p135, %p136
    %p138 = pneg %p137
    // Predicated region
    $region29: #{tpu_custom_call.1} parent=5 // pred_check
      _
    $region30: #{tpu_custom_call.1} parent=5 // pred_check_branch
      %140 = sbr.rel (%p137) target = $region32
    $region31: #{tpu_custom_call.1} parent=5 // pred_region
      %s141 = ssub.s32 %s9, 1
      %p142 = scmp.lt.s32.totalorder %s14, 1
      %s143 = scalar_select %p142, %s14, 1
      %s144 = smul.addr %s143, 8
      %s145 = scalar_lea.vmem %s0, %s144
      %p146 = pneg %p35
      %p147 = pneg %p32
      %p148 = pneg %p56
      %p149 = pneg %p53
      %p150 = pneg %p77
      %p151 = pneg %p74
      %p152 = pneg %p103
      %p153 = pneg %p100
      %p154 = scmp.lt.s32.totalorder %s14, 1
      %s155 = scalar_select %p154, %s14, 1
      %s156 = smul.addr %s155, 8
      %s157 = scalar_lea.vmem %s3, %s156
      %p158 = scmp.lt.s32.totalorder %s14, 1
      %s159 = scalar_select %p158, %s14, 1
      %s160 = smul.addr %s159, 8
      %s161 = scalar_lea.vmem %s0, %s160
      %p162 = scmp.lt.s32.totalorder %s14, 1
      %s163 = scalar_select %p162, %s14, 1
      %s164 = smul.addr %s163, 8
      %s165 = scalar_lea.vmem %s3, %s164
      %v167 = vld [vmem:[%s161] sm:$0xff]
      %v168 = vpack.c.bf16 %v167, %v167
      %v169 = vld [vmem:[%s1] sm:$0xf]
      %v170 = vld [vmem:[%s1 + $0x4] sm:$0xf]
      %v171 = vld [vmem:[%s1 + $0x8] sm:$0xf]
      %v172 = vld [vmem:[%s1 + $0xc] sm:$0xf]
      %v173 = vld [vmem:[%s2] sm:$0x1]
      %v175 = vlaneseq
      %v176 = vshrl.u32 %v175, 7
      %v177 = vsub.s32 0, %v176
      %v178 = vrot.slane %v173, %v177
      %v184 = vunpack.c.l.b16 %v169
      %v185 = vunpack.c.l.b16 %v170
      %v186 = vunpack.c.l.b16 %v171
      %v187 = vunpack.c.l.b16 %v172
      %v188 = vpack.c.b16 %v185, %v184
      %v189 = vpack.c.b16 %v187, %v186
      %vm192 = vcmask 261120
      %v194 = vsel %vm192, %v168, 0
      %196 = vmatprep.subr.bf16.mxu0 0
      %197 = vmatpush1.bf16.msra.mxu0 %v188
      %198 = vmatprep.subr.bf16.mxu0 0
      %199 = vmatpush1.bf16.msra.mxu0 %v189
      %200 = vmatprep.subr.bf16.mxu0 0
      %201 = vmatpush1.bf16.msra.mxu0 0
      %202 = vmatprep.subr.bf16.mxu0 0
      %203 = vmatpush1.bf16.msra.mxu0 0
      %204 = vmatprep.subr.bf16.mxu0 0
      %205 = vmatpush1.bf16.msra.mxu0 0
      %206 = vmatprep.subr.bf16.mxu0 0
      %207 = vmatpush1.bf16.msra.mxu0 0
      %208 = vmatprep.subr.bf16.mxu0 0
      %209 = vmatpush1.bf16.msra.mxu0 0
      %210 = vmatprep.subr.bf16.mxu0 0
      %211 = vmatpush1.bf16.msra.mxu0 0
      %212 = vmatprep.subr.bf16.mxu0 0
      %213 = vmatpush1.bf16.msra.mxu0 0
      %214 = vmatprep.subr.bf16.mxu0 0
      %215 = vmatpush1.bf16.msra.mxu0 0
      %216 = vmatprep.subr.bf16.mxu0 0
      %217 = vmatpush1.bf16.msra.mxu0 0
      %218 = vmatprep.subr.bf16.mxu0 0
      %219 = vmatpush1.bf16.msra.mxu0 0
      %220 = vmatprep.subr.bf16.mxu0 0
      %221 = vmatpush1.bf16.msra.mxu0 0
      %222 = vmatprep.subr.bf16.mxu0 0
      %223 = vmatpush1.bf16.msra.mxu0 0
      %224 = vmatprep.subr.bf16.mxu0 0
      %225 = vmatpush1.bf16.msra.mxu0 0
      %226 = vmatprep.subr.bf16.mxu0 0
      %227 = vmatpush1.bf16.msra.mxu0 0
      %228 = vmatprep.mubr.bf16.mxu0 0
      %229 = vmatmul.mubr.bf16.gmra.mrb[0].mxu0 %v194
      %v230 = vpop.f32.mrb[0].mxu0
      %v231 = vadd.f32 %v178, %v230
      %v232 = vpop.f32.mrb[0].mxu0
      %v233 = vpop.f32.mrb[0].mxu0
      %v234 = vpop.f32.mrb[0].mxu0
      %235 = vdwg.mxu0
      %vm236 = vcmask 39936
      %237 = vst.msk [vmem:[%s165] sm:$0xff] %vm236, %v231
      %p238 = scmp.lt.s32.totalorder %s14, 1
      %s239 = scalar_select %p238, %s14, 1
      %s240 = smul.addr %s239, 8
      %s241 = scalar_lea.vmem %s3, %s240
      // Predicated region
      $region33: #{tpu_custom_call.1} parent=31 // pred_check
        %p242 = pneg %p100
      $region34: #{tpu_custom_call.1} parent=31 // pred_check_branch
        %244 = sbr.rel (%p242) target = $region36
      $region35: #{tpu_custom_call.1} parent=31 // pred_region
        _
      $region36: #{tpu_custom_call.1} parent=31 // pred_fallthru
        _
    $region32: #{tpu_custom_call.1} parent=5 // pred_fallthru
      _
    %p245 = scmp.le.s32.totalorder 2, %s9
    // Predicated region
    $region37: #{tpu_custom_call.1} parent=5 // pred_check
      %p246 = pneg %p245
    $region38: #{tpu_custom_call.1} parent=5 // pred_check_branch
      %248 = sbr.rel (%p246) target = $region40
    $region39: #{tpu_custom_call.1} parent=5 // pred_region
      %s249 = ssub.s32 %s9, 2
      // Predicated region
      $region41: #{tpu_custom_call.1} parent=39 // pred_check
        %p250 = pneg %p106
      $region42: #{tpu_custom_call.1} parent=39 // pred_check_branch
        %252 = sbr.rel (%p250) target = $region44
      $region43: #{tpu_custom_call.1} parent=39 // pred_region
        %p253 = scmp.lt.s32.totalorder %s15, 1
        %s254 = scalar_select %p253, %s15, 1
        %s255 = smul.addr %s254, 8
        %s256 = scalar_lea.vmem %s3, %s255
      $region44: #{tpu_custom_call.1} parent=39 // pred_fallthru
        _
    $region40: #{tpu_custom_call.1} parent=5 // pred_fallthru
      _
  $region6: #{tpu_custom_call.1} parent=0 // loop_footer
    %s13 = sadd.s32 1, %s9
  $region7: #{tpu_custom_call.1} parent=0 // loop_footer_branch
    %8 = sbr.rel target = $region3
  $region8: #{tpu_custom_call.1} parent=0 // loop_exit
    _

</llo_original>
